<compile_context>
chip_gen: v6e
topology: v6e:2x2x1
jax: 0.10.0
libtpu: 0.0.40
codegen_flags: <defaults>
</compile_context>

<pallas_src>
import jax
import jax.numpy as jnp
from jax import lax
from jax.experimental import pallas as pl
from jax.experimental.pallas import tpu as pltpu

_LANE = 128


def _make_kernel(tile_rows, rows, inner, need_row_mask):
    def kernel(x_ref, y_ref, m_ref, acc_m_ref, acc_d_ref):
        c = pl.program_id(0)          # parallel slice
        i = pl.program_id(1)          # reduction step within the slice

        @pl.when(i == 0)
        def _():
            acc_m_ref[...] = jnp.zeros_like(acc_m_ref)
            acc_d_ref[...] = jnp.zeros_like(acc_d_ref)

        x = x_ref[...].astype(jnp.float32)
        y = y_ref[...].astype(jnp.float32)
        m = m_ref[...].astype(jnp.float32)

        d = jnp.abs(x - y)            # |x - y|
        md = jnp.abs(m) * d           # |x*m - y*m| == |m| * |x - y|

        if need_row_mask:
            blk = c * inner + i
            ridx = blk * tile_rows + lax.broadcasted_iota(
                jnp.int32, (tile_rows, _LANE), 0)
            valid = ridx < rows
            d = jnp.where(valid, d, 0.0)
            md = jnp.where(valid, md, 0.0)

        # (tile_rows,128) -> (tile_rows//8, 8, 128); axis-0 sum is vreg-wise
        # elementwise adds on the VPU (no cross-lane traffic in the hot loop).
        acc_m_ref[...] += md.reshape(-1, 8, _LANE).sum(axis=0)
        acc_d_ref[...] += d.reshape(-1, 8, _LANE).sum(axis=0)

    return kernel


def mask_l1_loss(x, y, mask, *, tile_rows=2048, num_parallel=2):
    """Pallas equivalent of the PyTorch mask_l1_loss.forward."""
    n_true = x.size  # true element count for the 'mean' reduction

    def as_slab(a):
        a = a.reshape(-1)             # contiguous row-major: free bitcast
        rem = n_true % _LANE
        if rem:
            # Rare path (n_elems not a multiple of 128): small zero-pad;
            # zeros contribute 0 to both sums.
            a = jnp.pad(a, (0, _LANE - rem))
        return a.reshape(-1, _LANE)

    xf, yf, mf = as_slab(x), as_slab(y), as_slab(mask)
    rows = xf.shape[0]

    # Block rows: multiple of 8, capped so tiny inputs don't get a huge block.
    t_rows = max(8, min(tile_rows, ((rows + 7) // 8) * 8))
    n_blocks = pl.cdiv(rows, t_rows)

    # Megacore: shard a leading 'parallel' axis across TensorCores when the
    # block count splits evenly; otherwise run single-slice.
    n_par = num_parallel if (num_parallel > 1
                             and n_blocks >= num_parallel
                             and n_blocks % num_parallel == 0) else 1
    inner = n_blocks // n_par

    need_row_mask = (rows % t_rows) != 0

    in_spec = pl.BlockSpec((t_rows, _LANE), lambda c, i: (c * inner + i, 0))
    out_spec = pl.BlockSpec((8, _LANE), lambda c, i: (c, 0))

    acc_m, acc_d = pl.pallas_call(
        _make_kernel(t_rows, rows, inner, need_row_mask),
        out_shape=(
            jax.ShapeDtypeStruct((n_par * 8, _LANE), jnp.float32),
            jax.ShapeDtypeStruct((n_par * 8, _LANE), jnp.float32),
        ),
        grid_spec=pltpu.PrefetchScalarGridSpec(
            num_scalar_prefetch=0,
            grid=(n_par, inner),
            in_specs=[in_spec, in_spec, in_spec],
            out_specs=[out_spec, out_spec],
        ),
        compiler_params=pltpu.CompilerParams(
            dimension_semantics=("parallel", "arbitrary"),
        ),
    )(xf, yf, mf)

    n = jnp.float32(n_true)
    return jnp.sum(acc_m) / n + 0.1 * (jnp.sum(acc_d) / n)


def mask_l1_loss_ref(x, y, mask):
    """Pure-JAX reference matching the PyTorch module."""
    x = x.astype(jnp.float32)
    y = y.astype(jnp.float32)
    mask = mask.astype(jnp.float32)
    return jnp.mean(jnp.abs(x * mask - y * mask)) + 0.1 * jnp.mean(jnp.abs(x - y))


if __name__ == "__main__":
    key = jax.random.PRNGKey(0)
    kx, ky, km = jax.random.split(key, 3)

    # NCHW-shaped inputs, consistent with a conv-net loss: (N, C, H, W)
    shape = (2, 4, 16, 16)
    x = jax.random.normal(kx, shape, dtype=jnp.float32)
    y = jax.random.normal(ky, shape, dtype=jnp.float32)
    mask = (jax.random.uniform(km, shape) > 0.5).astype(jnp.float32)

    loss = mask_l1_loss(x, y, mask)
    loss = jax.block_until_ready(loss)

    ref = mask_l1_loss_ref(x, y, mask)
    assert jnp.allclose(loss, ref, rtol=1e-5, atol=1e-6), (loss, ref)

    print("KERNEL_OK")
</pallas_src>

<mosaic_0001>
module attributes {stable_mosaic.version = 11 : i64} {
  func.func @kernel(%arg0: i32, %arg1: i32, %arg2: memref<16x128xf32, #tpu.memory_space<vmem>>, %arg3: memref<16x128xf32, #tpu.memory_space<vmem>>, %arg4: memref<16x128xf32, #tpu.memory_space<vmem>>, %arg5: memref<8x128xf32, #tpu.memory_space<vmem>>, %arg6: memref<8x128xf32, #tpu.memory_space<vmem>>) attributes {dimension_semantics = [#tpu.dimension_semantics<parallel>, #tpu.dimension_semantics<arbitrary>], iteration_bounds = array<i64: 1, 1>, scalar_prefetch = 0 : i64, scratch_operands = 0 : i64, tpu.core_type = #tpu.core_type<tc>, window_params = [{transform_indices = @transform_0, window_bounds = array<i64: 16, 128>}, {transform_indices = @transform_1, window_bounds = array<i64: 16, 128>}, {transform_indices = @transform_2, window_bounds = array<i64: 16, 128>}, {transform_indices = @transform_3, window_bounds = array<i64: 8, 128>}, {transform_indices = @transform_4, window_bounds = array<i64: 8, 128>}]} {
    %c0_i32 = arith.constant 0 : i32
    %0 = arith.cmpi eq, %arg1, %c0_i32 : i32
    %1 = arith.extui %0 : i1 to i32
    %c0_i32_0 = arith.constant 0 : i32
    %2 = arith.cmpi ne, %1, %c0_i32_0 : i32
    scf.if %2 {
      %cst_15 = arith.constant 0.000000e+00 : f32
      %20 = vector.broadcast %cst_15 : f32 to vector<8x128xf32>
      %c0_16 = arith.constant 0 : index
      %c0_17 = arith.constant 0 : index
      %21 = vector.load %arg5[%c0_16, %c0_17] : memref<8x128xf32, #tpu.memory_space<vmem>>, vector<8x128xf32>
      tpu.vector_store %arg5[%c0_16, %c0_17], %20 {strides = array<i32>} : memref<8x128xf32, #tpu.memory_space<vmem>>, vector<8x128xf32>,
      %cst_18 = arith.constant 0.000000e+00 : f32
      %22 = vector.broadcast %cst_18 : f32 to vector<8x128xf32>
      %c0_19 = arith.constant 0 : index
      %c0_20 = arith.constant 0 : index
      %23 = vector.load %arg6[%c0_19, %c0_20] : memref<8x128xf32, #tpu.memory_space<vmem>>, vector<8x128xf32>
      tpu.vector_store %arg6[%c0_19, %c0_20], %22 {strides = array<i32>} : memref<8x128xf32, #tpu.memory_space<vmem>>, vector<8x128xf32>,
    } else {
    }
    %c0 = arith.constant 0 : index
    %c0_1 = arith.constant 0 : index
    %3 = vector.load %arg2[%c0, %c0_1] : memref<16x128xf32, #tpu.memory_space<vmem>>, vector<16x128xf32>
    %c0_2 = arith.constant 0 : index
    %c0_3 = arith.constant 0 : index
    %4 = vector.load %arg3[%c0_2, %c0_3] : memref<16x128xf32, #tpu.memory_space<vmem>>, vector<16x128xf32>
    %c0_4 = arith.constant 0 : index
    %c0_5 = arith.constant 0 : index
    %5 = vector.load %arg4[%c0_4, %c0_5] : memref<16x128xf32, #tpu.memory_space<vmem>>, vector<16x128xf32>
    %6 = arith.subf %3, %4 : vector<16x128xf32>
    %7 = math.absf %6 : vector<16x128xf32>
    %8 = math.absf %5 : vector<16x128xf32>
    %9 = arith.mulf %8, %7 : vector<16x128xf32>
    %c0_6 = arith.constant 0 : index
    %c0_7 = arith.constant 0 : index
    %10 = vector.load %arg5[%c0_6, %c0_7] : memref<8x128xf32, #tpu.memory_space<vmem>>, vector<8x128xf32>
    %11 = vector.shape_cast %9 : vector<16x128xf32> to vector<2x8x128xf32>
    %cst = arith.constant dense<0.000000e+00> : vector<8x128xf32>
    %12 = vector.multi_reduction <add>, %11, %cst [0] : vector<2x8x128xf32> to vector<8x128xf32>
    %13 = arith.addf %10, %12 : vector<8x128xf32>
    %c0_8 = arith.constant 0 : index
    %c0_9 = arith.constant 0 : index
    %14 = vector.load %arg5[%c0_8, %c0_9] : memref<8x128xf32, #tpu.memory_space<vmem>>, vector<8x128xf32>
    tpu.vector_store %arg5[%c0_8, %c0_9], %13 {strides = array<i32>} : memref<8x128xf32, #tpu.memory_space<vmem>>, vector<8x128xf32>,
    %c0_10 = arith.constant 0 : index
    %c0_11 = arith.constant 0 : index
    %15 = vector.load %arg6[%c0_10, %c0_11] : memref<8x128xf32, #tpu.memory_space<vmem>>, vector<8x128xf32>
    %16 = vector.shape_cast %7 : vector<16x128xf32> to vector<2x8x128xf32>
    %cst_12 = arith.constant dense<0.000000e+00> : vector<8x128xf32>
    %17 = vector.multi_reduction <add>, %16, %cst_12 [0] : vector<2x8x128xf32> to vector<8x128xf32>
    %18 = arith.addf %15, %17 : vector<8x128xf32>
    %c0_13 = arith.constant 0 : index
    %c0_14 = arith.constant 0 : index
    %19 = vector.load %arg6[%c0_13, %c0_14] : memref<8x128xf32, #tpu.memory_space<vmem>>, vector<8x128xf32>
    tpu.vector_store %arg6[%c0_13, %c0_14], %18 {strides = array<i32>} : memref<8x128xf32, #tpu.memory_space<vmem>>, vector<8x128xf32>,
    return
  }
  func.func @transform_0(%arg0: i32, %arg1: i32) -> (i32, i32) {
    %c1_i32 = arith.constant 1 : i32
    %0 = arith.muli %arg0, %c1_i32 : i32
    %1 = arith.addi %0, %arg1 : i32
    %c0_i32 = arith.constant 0 : i32
    %c0_i32_0 = arith.constant 0 : i32
    return %1, %c0_i32 : i32, i32
  }
  func.func @transform_1(%arg0: i32, %arg1: i32) -> (i32, i32) {
    %c1_i32 = arith.constant 1 : i32
    %0 = arith.muli %arg0, %c1_i32 : i32
    %1 = arith.addi %0, %arg1 : i32
    %c0_i32 = arith.constant 0 : i32
    %c0_i32_0 = arith.constant 0 : i32
    return %1, %c0_i32 : i32, i32
  }
  func.func @transform_2(%arg0: i32, %arg1: i32) -> (i32, i32) {
    %c1_i32 = arith.constant 1 : i32
    %0 = arith.muli %arg0, %c1_i32 : i32
    %1 = arith.addi %0, %arg1 : i32
    %c0_i32 = arith.constant 0 : i32
    %c0_i32_0 = arith.constant 0 : i32
    return %1, %c0_i32 : i32, i32
  }
  func.func @transform_3(%arg0: i32, %arg1: i32) -> (i32, i32) {
    %c0_i32 = arith.constant 0 : i32
    %c0_i32_0 = arith.constant 0 : i32
    return %arg0, %c0_i32 : i32, i32
  }
  func.func @transform_4(%arg0: i32, %arg1: i32) -> (i32, i32) {
    %c0_i32 = arith.constant 0 : i32
    %c0_i32_0 = arith.constant 0 : i32
    return %arg0, %c0_i32 : i32, i32
  }
}

</mosaic_0001>

<llo_original>
// kernel: tpu_custom_call.1
$region0: #{tpu_custom_call.1}
  #allocation0 [shape = 'u32[]', space=smem, size = 0x4, offset = 0x4, fixed_abs, tag = 'smem constant byte address 0x4 - core index']
  #allocation1 [shape = 'u32[144,128]{1,0:T(1,128)}', space=vmem, size = 0x12000, scoped, tag = 'internal scratch']
  %s0 = inlined_call_operand.hbm [shape: f32[16,128], index: 0, kind: input, shape index: {}]
  %s1 = inlined_call_operand.hbm [shape: f32[16,128], index: 1, kind: input, shape index: {}]
  %s2 = inlined_call_operand.hbm [shape: f32[16,128], index: 2, kind: input, shape index: {}]
  %s3 = inlined_call_operand.hbm [shape: f32[8,128], index: 3, kind: output, shape index: {0}]
  %s4 = inlined_call_operand.hbm [shape: f32[8,128], index: 4, kind: output, shape index: {1}]
  %5 = xla_tuple %s3, %s4
  %s6 = sld [smem:[#allocation0]]
  $region46: #{tpu_custom_call.1} parent=0
    _
  %s8 = ssub.s32 1, %s6
  %s9 = scalar_select 0, %s8, %s6
  $region1: #{tpu_custom_call.1} parent=0
    #allocation2 [shape = 'u8[8192]{0}', space=vmem, size = 0x2000, scoped, tag = 'input window, operand 0, single buffered']
    #allocation3 [shape = 's32[1]{0}', space=sflag, size = 0x4, scoped, tag = 'scoped memory for tpu_custom_call.1']
    #allocation4 [shape = 's32[1]{0}', space=sflag, size = 0x4, scoped, tag = 'scoped memory for tpu_custom_call.1']
    #allocation5 [shape = 'u8[8192]{0}', space=vmem, size = 0x2000, scoped, tag = 'input window, operand 1, single buffered']
    #allocation6 [shape = 's32[1]{0}', space=sflag, size = 0x4, scoped, tag = 'scoped memory for tpu_custom_call.1']
    #allocation7 [shape = 'u8[8192]{0}', space=vmem, size = 0x2000, scoped, tag = 'input window, operand 2, single buffered']
    #allocation8 [shape = 'u8[4096]{0}', space=vmem, size = 0x1000, scoped, tag = 'output window, operand 0, single buffered']
    #allocation9 [shape = 'u8[4096]{0}', space=vmem, size = 0x1000, scoped, tag = 'output window, operand 1, single buffered']
    #allocation10 [shape = 's32[1]{0}', space=sflag, size = 0x4, scoped, tag = 'scoped memory for tpu_custom_call.1']
    %10 = vsyncpa [#allocation3], 0
    %11 = vsyncpa [#allocation6], 0
    %12 = vsyncpa [#allocation4], 0
    %13 = vsyncpa [#allocation10], 0
    // Predicated region
    $region2: #{tpu_custom_call.1} parent=1 // pred_check
      _
    $region3: #{tpu_custom_call.1} parent=1 // pred_check_branch
      %15 = sbr.rel (0) target = $region5
    $region4: #{tpu_custom_call.1} parent=1 // pred_region
      %s16 = sadd.s32 0, 0
      %s17 = smul.u32 2, %s16
      %s19 = ssub.s32 256, 256
      %20 = vsyncadd [#allocation3], %s19
      %s21 = smul.addr %s17, 128
      %s22 = scalar_lea.hbm %s0, %s21
      %s23 = sshll.u32 [#allocation2], 4
      %s24 = int_to_ptr.vmem [resolvable:$true] %s23
      %29 = dma.hbm_to_vmem [thread:$0]  %s22, 256, %s24, [#allocation3], 128, 128, 8
    $region5: #{tpu_custom_call.1} parent=1 // pred_fallthru
      _
    // Predicated region
    $region6: #{tpu_custom_call.1} parent=1 // pred_check
      _
    $region7: #{tpu_custom_call.1} parent=1 // pred_check_branch
      %31 = sbr.rel (0) target = $region9
    $region8: #{tpu_custom_call.1} parent=1 // pred_region
      %s32 = sadd.s32 0, 0
      %s33 = smul.u32 2, %s32
      %s35 = ssub.s32 256, 256
      %36 = vsyncadd [#allocation6], %s35
      %s37 = smul.addr %s33, 128
      %s38 = scalar_lea.hbm %s1, %s37
      %s39 = sshll.u32 [#allocation5], 4
      %s40 = int_to_ptr.vmem [resolvable:$true] %s39
      %45 = dma.hbm_to_vmem [thread:$0]  %s38, 256, %s40, [#allocation6], 128, 128, 8
    $region9: #{tpu_custom_call.1} parent=1 // pred_fallthru
      _
    // Predicated region
    $region10: #{tpu_custom_call.1} parent=1 // pred_check
      _
    $region11: #{tpu_custom_call.1} parent=1 // pred_check_branch
      %47 = sbr.rel (0) target = $region13
    $region12: #{tpu_custom_call.1} parent=1 // pred_region
      %s48 = sadd.s32 0, 0
      %s49 = smul.u32 2, %s48
      %s51 = ssub.s32 256, 256
      %52 = vsyncadd [#allocation6], %s51
      %s53 = smul.addr %s49, 128
      %s54 = scalar_lea.hbm %s2, %s53
      %s55 = sshll.u32 [#allocation7], 4
      %s56 = int_to_ptr.vmem [resolvable:$true] %s55
      %61 = dma.hbm_to_vmem [thread:$0]  %s54, 256, %s56, [#allocation6], 128, 128, 8
    $region13: #{tpu_custom_call.1} parent=1 // pred_fallthru
      _
    // Predicated region
    $region14: #{tpu_custom_call.1} parent=1 // pred_check
      _
    $region15: #{tpu_custom_call.1} parent=1 // pred_check_branch
      %63 = sbr.rel (0) target = $region17
    $region16: #{tpu_custom_call.1} parent=1 // pred_region
      %64 = dma.done [#allocation3], 256
    $region17: #{tpu_custom_call.1} parent=1 // pred_fallthru
      _
    // Predicated region
    $region18: #{tpu_custom_call.1} parent=1 // pred_check
      _
    $region19: #{tpu_custom_call.1} parent=1 // pred_check_branch
      %66 = sbr.rel (0) target = $region21
    $region20: #{tpu_custom_call.1} parent=1 // pred_region
      %67 = dma.done [#allocation6], 256
    $region21: #{tpu_custom_call.1} parent=1 // pred_fallthru
      _
    // Predicated region
    $region22: #{tpu_custom_call.1} parent=1 // pred_check
      _
    $region23: #{tpu_custom_call.1} parent=1 // pred_check_branch
      %69 = sbr.rel (0) target = $region25
    $region24: #{tpu_custom_call.1} parent=1 // pred_region
      %70 = dma.done [#allocation6], 256
    $region25: #{tpu_custom_call.1} parent=1 // pred_fallthru
      _
    %s71 = sadd.s32 0, 0
    %s72 = smul.u32 2, %s71
    %s73 = sadd.s32 0, 0
    %s74 = smul.u32 2, %s73
    %s75 = sadd.s32 0, 0
    %s76 = smul.u32 2, %s75
    %p77 = scmp.eq.s32.totalorder 0, 0
    // Predicated region
    $region26: #{tpu_custom_call.1} parent=1 // pred_check
      %p78 = pneg %p77
    $region27: #{tpu_custom_call.1} parent=1 // pred_check_branch
      %80 = sbr.rel (%p78) target = $region29
    $region28: #{tpu_custom_call.1} parent=1 // pred_region
      %81 = vst [vmem:[#allocation8] sm:$0xff] 0.0
      %82 = vst [vmem:[#allocation9] sm:$0xff] 0.0
    $region29: #{tpu_custom_call.1} parent=1 // pred_fallthru
      _
    %v83 = vld [vmem:[#allocation2] sm:$0xff]
    %v84 = vld [vmem:[#allocation2 + $0x8] sm:$0xff]
    %v85 = vld [vmem:[#allocation5] sm:$0xff]
    %v86 = vld [vmem:[#allocation5 + $0x8] sm:$0xff]
    %v87 = vld [vmem:[#allocation7] sm:$0xff]
    %v88 = vld [vmem:[#allocation7 + $0x8] sm:$0xff]
    %v89 = vsub.f32 %v83, %v85
    %v90 = vsub.f32 %v84, %v86
    %v91 = vand.u32 2147483647, %v89
    %v92 = vand.u32 2147483647, %v90
    %v93 = vand.u32 2147483647, %v87
    %v94 = vand.u32 2147483647, %v88
    %v95 = vmul.f32 %v93, %v91
    %v96 = vmul.f32 %v94, %v92
    %v97 = vld [vmem:[#allocation8] sm:$0xff]
    %v98 = vadd.f32 %v95, %v96
    %v99 = vadd.f32 %v97, %v98
    %100 = vst [vmem:[#allocation8] sm:$0xff] %v99
    %v101 = vld [vmem:[#allocation9] sm:$0xff]
    %v102 = vadd.f32 %v91, %v92
    %v103 = vadd.f32 %v101, %v102
    %104 = vst [vmem:[#allocation9] sm:$0xff] %v103
    // Predicated region
    $region30: #{tpu_custom_call.1} parent=1 // pred_check
      _
    $region31: #{tpu_custom_call.1} parent=1 // pred_check_branch
      %106 = sbr.rel (0) target = $region33
    $region32: #{tpu_custom_call.1} parent=1 // pred_region
      %s108 = ssub.s32 128, 128
      %109 = vsyncadd [#allocation4], %s108
      %s111 = sshll.u32 [#allocation8], 4
      %s112 = int_to_ptr.vmem [resolvable:$true] %s111
      %114 = dma.vmem_to_hbm [thread:$0]  %s112, 128, %s3, [#allocation4]
    $region33: #{tpu_custom_call.1} parent=1 // pred_fallthru
      _
    // Predicated region
    $region34: #{tpu_custom_call.1} parent=1 // pred_check
      _
    $region35: #{tpu_custom_call.1} parent=1 // pred_check_branch
      %116 = sbr.rel (0) target = $region37
    $region36: #{tpu_custom_call.1} parent=1 // pred_region
      %s118 = ssub.s32 128, 128
      %119 = vsyncadd [#allocation10], %s118
      %s121 = sshll.u32 [#allocation9], 4
      %s122 = int_to_ptr.vmem [resolvable:$true] %s121
      %124 = dma.vmem_to_hbm [thread:$0]  %s122, 128, %s4, [#allocation10]
    $region37: #{tpu_custom_call.1} parent=1 // pred_fallthru
      _
    // Predicated region
    $region38: #{tpu_custom_call.1} parent=1 // pred_check
      _
    $region39: #{tpu_custom_call.1} parent=1 // pred_check_branch
      %126 = sbr.rel (0) target = $region41
    $region40: #{tpu_custom_call.1} parent=1 // pred_region
      %127 = dma.done [#allocation4], 128
    $region41: #{tpu_custom_call.1} parent=1 // pred_fallthru
      _
    // Predicated region
    $region42: #{tpu_custom_call.1} parent=1 // pred_check
      _
    $region43: #{tpu_custom_call.1} parent=1 // pred_check_branch
      %129 = sbr.rel (0) target = $region45
    $region44: #{tpu_custom_call.1} parent=1 // pred_region
      %130 = dma.done [#allocation10], 128
    $region45: #{tpu_custom_call.1} parent=1 // pred_fallthru
      _
    %131 = vsyncpa [#allocation3], 1
    %132 = vsyncpa [#allocation6], 1
    %133 = vsyncpa [#allocation4], 1
    %134 = vsyncpa [#allocation10], 1

</llo_original>
